<compile_context>
chip_gen: v6e
topology: v6e:2x2x1
jax: 0.10.0
libtpu: 0.0.40
codegen_flags: <defaults>
</compile_context>

<pallas_src>
import functools

import jax
import jax.numpy as jnp
from jax.experimental import pallas as pl
from jax.experimental.pallas import tpu as pltpu


def _round_up(v, m):
    return (v + m - 1) // m * m


def _fused_mlp_kernel(*refs, layer_meta, eps):
    """Fused MLP forward on one row tile.

    refs = (x_ref, <per-layer params...>, o_ref)
      hidden layers contribute (W, b, gamma, beta) refs, last layer (W, b).
    layer_meta = tuple of (true_out_features, has_layernorm) per Linear.
    All feature dims are zero-padded to multiples of 128 by the wrapper.
    """
    x_ref = refs[0]
    o_ref = refs[-1]
    params = refs[1:-1]

    h = x_ref[...].astype(jnp.float32)
    p = 0
    for n_true, has_ln in layer_meta:
        w_ref, b_ref = params[p], params[p + 1]
        p += 2

        # Linear: MXU matmul with f32 accumulation + bias.
        y = jnp.dot(h, w_ref[...], preferred_element_type=jnp.float32)
        y = y + b_ref[...].astype(jnp.float32)

        if has_ln:
            g_ref, beta_ref = params[p], params[p + 1]
            p += 2
            n_pad = y.shape[-1]
            inv_n = jnp.float32(1.0 / n_true)

            # Padded lanes of y are exactly 0 (zero-padded W cols / bias), so
            # the sum only sees the true features; divide by the TRUE count.
            mean = jnp.sum(y, axis=-1, keepdims=True) * inv_n
            diff = y - mean
            if n_pad != n_true:
                lane = jax.lax.broadcasted_iota(jnp.int32, (1, n_pad), 1)
                diff = jnp.where(lane < n_true, diff, 0.0)

            # Two-pass biased variance (nn.LayerNorm semantics), clamped >= 0
            # implicitly since it is a sum of squares.
            var = jnp.sum(diff * diff, axis=-1, keepdims=True) * inv_n
            inv = jax.lax.rsqrt(var + jnp.float32(eps))

            y = diff * inv * g_ref[...].astype(jnp.float32) \
                + beta_ref[...].astype(jnp.float32)
            # Padded lanes: diff = 0, gamma = beta = 0 -> stay exactly 0,
            # so zero-padded W rows of the next layer see no garbage.
            h = jnp.maximum(y, 0.0)
        else:
            h = y

    o_ref[...] = h.astype(o_ref.dtype)


def simple_fully_connected(x, layer_params, *, eps=1e-5, row_tile=512):
    """Forward pass of SimpleFullyConnected.

    x: (..., d0)
    layer_params: list of tuples, one per Linear layer:
      hidden layers: (W[in,out], b[out], ln_gamma[out], ln_beta[out])
      last layer:    (W[in,out], b[out])
    """
    lead = x.shape[:-1]
    rows = 1
    for s in lead:
        rows *= s
    d0 = x.shape[-1]
    h = x.reshape(rows, d0)

    # ---- Row padding / tiling -------------------------------------------
    rows_pad0 = _round_up(max(rows, 8), 8)
    if rows_pad0 <= row_tile:
        # Split into >= 2 row tiles so ("parallel",) can shard across both
        # TensorCores on v7x even for small row counts.
        tr = max(8, _round_up((rows_pad0 + 1) // 2, 8))
    else:
        tr = row_tile
    rows_pad = _round_up(rows_pad0, tr)
    # Padded rows are zeros; they flow through safely (eps > 0, two-pass var)
    # and are sliced off at the end.

    # ---- Lane-dense feature padding (multiples of 128) --------------------
    d0_pad = _round_up(d0, 128)
    if rows_pad != rows or d0_pad != d0:
        h = jnp.pad(h, ((0, rows_pad - rows), (0, d0_pad - d0)))

    num_layers = len(layer_params)
    args = [h]
    in_specs = [pl.BlockSpec((tr, d0_pad), lambda i: (i, 0))]
    layer_meta = []
    din_pad = d0_pad

    for li, lp in enumerate(layer_params):
        w, b = lp[0], lp[1]
        d_in, d_out = w.shape
        dout_pad = _round_up(d_out, 128)

        w_p = jnp.pad(w.astype(jnp.float32),
                      ((0, din_pad - d_in), (0, dout_pad - d_out)))
        b_p = jnp.pad(b.astype(jnp.float32),
                      (0, dout_pad - d_out)).reshape(1, dout_pad)
        args += [w_p, b_p]
        in_specs += [pl.BlockSpec((din_pad, dout_pad), lambda i: (0, 0)),
                     pl.BlockSpec((1, dout_pad), lambda i: (0, 0))]

        has_ln = li != num_layers - 1
        if has_ln:
            g_p = jnp.pad(lp[2].astype(jnp.float32),
                          (0, dout_pad - d_out)).reshape(1, dout_pad)
            be_p = jnp.pad(lp[3].astype(jnp.float32),
                           (0, dout_pad - d_out)).reshape(1, dout_pad)
            args += [g_p, be_p]
            in_specs += [pl.BlockSpec((1, dout_pad), lambda i: (0, 0)),
                         pl.BlockSpec((1, dout_pad), lambda i: (0, 0))]

        layer_meta.append((d_out, has_ln))
        din_pad = dout_pad

    d_last = layer_params[-1][0].shape[1]
    d_last_pad = din_pad

    kern = functools.partial(_fused_mlp_kernel,
                             layer_meta=tuple(layer_meta), eps=eps)

    out = pl.pallas_call(
        kern,
        out_shape=jax.ShapeDtypeStruct((rows_pad, d_last_pad), x.dtype),
        grid_spec=pltpu.PrefetchScalarGridSpec(
            num_scalar_prefetch=0,
            grid=(rows_pad // tr,),
            in_specs=in_specs,
            # Lane-dense (multiple of 128) output -> unmasked vst.
            out_specs=pl.BlockSpec((tr, d_last_pad), lambda i: (i, 0)),
        ),
        compiler_params=pltpu.CompilerParams(
            # Row tiles are independent -> shard across TensorCores (v7x).
            dimension_semantics=("parallel",),
        ),
    )(*args)

    out = out[:rows, :d_last]
    return out.reshape(lead + (d_last,))


def _reference(x, layer_params, eps=1e-5):
    # Pure-JAX reference matching the PyTorch module's semantics.
    lead = x.shape[:-1]
    h = x.reshape(-1, x.shape[-1])
    num_layers = len(layer_params)
    for i, lp in enumerate(layer_params):
        w, b = lp[0], lp[1]
        h = h @ w + b
        if i != num_layers - 1:
            g, beta = lp[2], lp[3]
            mean = jnp.mean(h, axis=-1, keepdims=True)
            var = jnp.mean((h - mean) ** 2, axis=-1, keepdims=True)  # biased
            h = (h - mean) / jnp.sqrt(var + eps) * g + beta
            h = jnp.maximum(h, 0.0)
    return h.reshape(lead + (h.shape[-1],))


if __name__ == "__main__":
    key = jax.random.PRNGKey(0)
    dims = (32, 64, 48, 16)          # SimpleFullyConnected(dims)
    batch, seq = 2, 8

    keys = jax.random.split(key, 1 + 4 * (len(dims) - 1))
    x = jax.random.normal(keys[0], (batch, seq, dims[0]), dtype=jnp.float32)

    layer_params = []
    ki = 1
    for i in range(len(dims) - 1):
        fan_in, fan_out = dims[i], dims[i + 1]
        w = jax.random.normal(keys[ki], (fan_in, fan_out), jnp.float32) / jnp.sqrt(fan_in)
        ki += 1
        b = 0.1 * jax.random.normal(keys[ki], (fan_out,), jnp.float32)
        ki += 1
        if i != len(dims) - 2:
            g = 1.0 + 0.1 * jax.random.normal(keys[ki], (fan_out,), jnp.float32)
            ki += 1
            beta = 0.1 * jax.random.normal(keys[ki], (fan_out,), jnp.float32)
            ki += 1
            layer_params.append((w, b, g, beta))
        else:
            layer_params.append((w, b))

    out = simple_fully_connected(x, layer_params, eps=1e-5)
    out = jax.block_until_ready(out)

    ref = _reference(x, layer_params, eps=1e-5)
    assert out.shape == (batch, seq, dims[-1]) and out.dtype == x.dtype
    assert jnp.allclose(out, ref, atol=1e-4, rtol=1e-4)

    print("KERNEL_OK")
</pallas_src>

<mosaic_0001>
module attributes {stable_mosaic.version = 11 : i64} {
  func.func @_fused_mlp_kernel(%arg0: i32, %arg1: memref<8x128xf32, #tpu.memory_space<vmem>>, %arg2: memref<128x128xf32, #tpu.memory_space<vmem>>, %arg3: memref<1x128xf32, #tpu.memory_space<vmem>>, %arg4: memref<1x128xf32, #tpu.memory_space<vmem>>, %arg5: memref<1x128xf32, #tpu.memory_space<vmem>>, %arg6: memref<128x128xf32, #tpu.memory_space<vmem>>, %arg7: memref<1x128xf32, #tpu.memory_space<vmem>>, %arg8: memref<1x128xf32, #tpu.memory_space<vmem>>, %arg9: memref<1x128xf32, #tpu.memory_space<vmem>>, %arg10: memref<128x128xf32, #tpu.memory_space<vmem>>, %arg11: memref<1x128xf32, #tpu.memory_space<vmem>>, %arg12: memref<8x128xf32, #tpu.memory_space<vmem>>) attributes {dimension_semantics = [#tpu.dimension_semantics<parallel>], iteration_bounds = array<i64: 2>, scalar_prefetch = 0 : i64, scratch_operands = 0 : i64, tpu.core_type = #tpu.core_type<tc>, window_params = [{transform_indices = @transform_0, window_bounds = array<i64: 8, 128>}, {pipeline_mode = #tpu.pipeline_mode<synchronous>, transform_indices = @transform_1, window_bounds = array<i64: 128, 128>}, {pipeline_mode = #tpu.pipeline_mode<synchronous>, transform_indices = @transform_2, window_bounds = array<i64: 1, 128>}, {pipeline_mode = #tpu.pipeline_mode<synchronous>, transform_indices = @transform_3, window_bounds = array<i64: 1, 128>}, {pipeline_mode = #tpu.pipeline_mode<synchronous>, transform_indices = @transform_4, window_bounds = array<i64: 1, 128>}, {pipeline_mode = #tpu.pipeline_mode<synchronous>, transform_indices = @transform_5, window_bounds = array<i64: 128, 128>}, {pipeline_mode = #tpu.pipeline_mode<synchronous>, transform_indices = @transform_6, window_bounds = array<i64: 1, 128>}, {pipeline_mode = #tpu.pipeline_mode<synchronous>, transform_indices = @transform_7, window_bounds = array<i64: 1, 128>}, {pipeline_mode = #tpu.pipeline_mode<synchronous>, transform_indices = @transform_8, window_bounds = array<i64: 1, 128>}, {pipeline_mode = #tpu.pipeline_mode<synchronous>, transform_indices = @transform_9, window_bounds = array<i64: 128, 128>}, {pipeline_mode = #tpu.pipeline_mode<synchronous>, transform_indices = @transform_10, window_bounds = array<i64: 1, 128>}, {transform_indices = @transform_11, window_bounds = array<i64: 8, 128>}]} {
    %c0 = arith.constant 0 : index
    %c0_0 = arith.constant 0 : index
    %0 = vector.load %arg1[%c0, %c0_0] : memref<8x128xf32, #tpu.memory_space<vmem>>, vector<8x128xf32>
    %c0_1 = arith.constant 0 : index
    %c0_2 = arith.constant 0 : index
    %1 = vector.load %arg2[%c0_1, %c0_2] : memref<128x128xf32, #tpu.memory_space<vmem>>, vector<128x128xf32>
    %cst = arith.constant dense<0.000000e+00> : vector<8x128xf32>
    %2 = tpu.matmul %0, %1, %cst {dimension_numbers = #tpu.dot_dimension_numbers<[1], [0], [0], [1], [0, 0, 1, 1], [], []>} : vector<8x128xf32>, vector<128x128xf32>, vector<8x128xf32> -> vector<8x128xf32>
    %c0_3 = arith.constant 0 : index
    %c0_4 = arith.constant 0 : index
    %3 = vector.load %arg3[%c0_3, %c0_4] : memref<1x128xf32, #tpu.memory_space<vmem>>, vector<1x128xf32>
    %4 = vector.broadcast %3 : vector<1x128xf32> to vector<8x128xf32>
    %5 = arith.addf %2, %4 : vector<8x128xf32>
    %cst_5 = arith.constant dense<0.000000e+00> : vector<8xf32>
    %6 = vector.multi_reduction <add>, %5, %cst_5 [1] : vector<8x128xf32> to vector<8xf32>
    %7 = vector.shape_cast %6 : vector<8xf32> to vector<8x1xf32>
    %cst_6 = arith.constant 1.562500e-02 : f32
    %8 = vector.broadcast %cst_6 : f32 to vector<8x1xf32>
    %9 = arith.mulf %7, %8 : vector<8x1xf32>
    %10 = vector.broadcast %9 : vector<8x1xf32> to vector<8x128xf32>
    %11 = arith.subf %5, %10 : vector<8x128xf32>
    %12 = tpu.iota {dimensions = array<i32: 1>} : vector<1x128xi32>
    %c64_i32 = arith.constant 64 : i32
    %13 = vector.broadcast %c64_i32 : i32 to vector<1x128xi32>
    %14 = arith.cmpi slt, %12, %13 : vector<1x128xi32>
    %cst_7 = arith.constant 0.000000e+00 : f32
    %15 = vector.shape_cast %14 : vector<1x128xi1> to vector<1x128xi1>
    %16 = vector.broadcast %15 : vector<1x128xi1> to vector<8x128xi1>
    %17 = vector.broadcast %cst_7 : f32 to vector<8x128xf32>
    %18 = arith.select %16, %11, %17 : vector<8x128xi1>, vector<8x128xf32>
    %19 = arith.mulf %18, %18 : vector<8x128xf32>
    %cst_8 = arith.constant dense<0.000000e+00> : vector<8xf32>
    %20 = vector.multi_reduction <add>, %19, %cst_8 [1] : vector<8x128xf32> to vector<8xf32>
    %21 = vector.shape_cast %20 : vector<8xf32> to vector<8x1xf32>
    %cst_9 = arith.constant 1.562500e-02 : f32
    %22 = vector.broadcast %cst_9 : f32 to vector<8x1xf32>
    %23 = arith.mulf %21, %22 : vector<8x1xf32>
    %cst_10 = arith.constant 9.99999974E-6 : f32
    %24 = vector.broadcast %cst_10 : f32 to vector<8x1xf32>
    %25 = arith.addf %23, %24 : vector<8x1xf32>
    %26 = math.rsqrt %25 : vector<8x1xf32>
    %27 = vector.broadcast %26 : vector<8x1xf32> to vector<8x128xf32>
    %28 = arith.mulf %18, %27 : vector<8x128xf32>
    %c0_11 = arith.constant 0 : index
    %c0_12 = arith.constant 0 : index
    %29 = vector.load %arg4[%c0_11, %c0_12] : memref<1x128xf32, #tpu.memory_space<vmem>>, vector<1x128xf32>
    %30 = vector.broadcast %29 : vector<1x128xf32> to vector<8x128xf32>
    %31 = arith.mulf %28, %30 : vector<8x128xf32>
    %c0_13 = arith.constant 0 : index
    %c0_14 = arith.constant 0 : index
    %32 = vector.load %arg5[%c0_13, %c0_14] : memref<1x128xf32, #tpu.memory_space<vmem>>, vector<1x128xf32>
    %33 = vector.broadcast %32 : vector<1x128xf32> to vector<8x128xf32>
    %34 = arith.addf %31, %33 : vector<8x128xf32>
    %cst_15 = arith.constant 0.000000e+00 : f32
    %35 = vector.broadcast %cst_15 : f32 to vector<8x128xf32>
    %36 = arith.maximumf %34, %35 : vector<8x128xf32>
    %c0_16 = arith.constant 0 : index
    %c0_17 = arith.constant 0 : index
    %37 = vector.load %arg6[%c0_16, %c0_17] : memref<128x128xf32, #tpu.memory_space<vmem>>, vector<128x128xf32>
    %cst_18 = arith.constant dense<0.000000e+00> : vector<8x128xf32>
    %38 = tpu.matmul %36, %37, %cst_18 {dimension_numbers = #tpu.dot_dimension_numbers<[1], [0], [0], [1], [0, 0, 1, 1], [], []>} : vector<8x128xf32>, vector<128x128xf32>, vector<8x128xf32> -> vector<8x128xf32>
    %c0_19 = arith.constant 0 : index
    %c0_20 = arith.constant 0 : index
    %39 = vector.load %arg7[%c0_19, %c0_20] : memref<1x128xf32, #tpu.memory_space<vmem>>, vector<1x128xf32>
    %40 = vector.broadcast %39 : vector<1x128xf32> to vector<8x128xf32>
    %41 = arith.addf %38, %40 : vector<8x128xf32>
    %cst_21 = arith.constant dense<0.000000e+00> : vector<8xf32>
    %42 = vector.multi_reduction <add>, %41, %cst_21 [1] : vector<8x128xf32> to vector<8xf32>
    %43 = vector.shape_cast %42 : vector<8xf32> to vector<8x1xf32>
    %cst_22 = arith.constant 0.020833334 : f32
    %44 = vector.broadcast %cst_22 : f32 to vector<8x1xf32>
    %45 = arith.mulf %43, %44 : vector<8x1xf32>
    %46 = vector.broadcast %45 : vector<8x1xf32> to vector<8x128xf32>
    %47 = arith.subf %41, %46 : vector<8x128xf32>
    %48 = tpu.iota {dimensions = array<i32: 1>} : vector<1x128xi32>
    %c48_i32 = arith.constant 48 : i32
    %49 = vector.broadcast %c48_i32 : i32 to vector<1x128xi32>
    %50 = arith.cmpi slt, %48, %49 : vector<1x128xi32>
    %cst_23 = arith.constant 0.000000e+00 : f32
    %51 = vector.shape_cast %50 : vector<1x128xi1> to vector<1x128xi1>
    %52 = vector.broadcast %51 : vector<1x128xi1> to vector<8x128xi1>
    %53 = vector.broadcast %cst_23 : f32 to vector<8x128xf32>
    %54 = arith.select %52, %47, %53 : vector<8x128xi1>, vector<8x128xf32>
    %55 = arith.mulf %54, %54 : vector<8x128xf32>
    %cst_24 = arith.constant dense<0.000000e+00> : vector<8xf32>
    %56 = vector.multi_reduction <add>, %55, %cst_24 [1] : vector<8x128xf32> to vector<8xf32>
    %57 = vector.shape_cast %56 : vector<8xf32> to vector<8x1xf32>
    %cst_25 = arith.constant 0.020833334 : f32
    %58 = vector.broadcast %cst_25 : f32 to vector<8x1xf32>
    %59 = arith.mulf %57, %58 : vector<8x1xf32>
    %cst_26 = arith.constant 9.99999974E-6 : f32
    %60 = vector.broadcast %cst_26 : f32 to vector<8x1xf32>
    %61 = arith.addf %59, %60 : vector<8x1xf32>
    %62 = math.rsqrt %61 : vector<8x1xf32>
    %63 = vector.broadcast %62 : vector<8x1xf32> to vector<8x128xf32>
    %64 = arith.mulf %54, %63 : vector<8x128xf32>
    %c0_27 = arith.constant 0 : index
    %c0_28 = arith.constant 0 : index
    %65 = vector.load %arg8[%c0_27, %c0_28] : memref<1x128xf32, #tpu.memory_space<vmem>>, vector<1x128xf32>
    %66 = vector.broadcast %65 : vector<1x128xf32> to vector<8x128xf32>
    %67 = arith.mulf %64, %66 : vector<8x128xf32>
    %c0_29 = arith.constant 0 : index
    %c0_30 = arith.constant 0 : index
    %68 = vector.load %arg9[%c0_29, %c0_30] : memref<1x128xf32, #tpu.memory_space<vmem>>, vector<1x128xf32>
    %69 = vector.broadcast %68 : vector<1x128xf32> to vector<8x128xf32>
    %70 = arith.addf %67, %69 : vector<8x128xf32>
    %cst_31 = arith.constant 0.000000e+00 : f32
    %71 = vector.broadcast %cst_31 : f32 to vector<8x128xf32>
    %72 = arith.maximumf %70, %71 : vector<8x128xf32>
    %c0_32 = arith.constant 0 : index
    %c0_33 = arith.constant 0 : index
    %73 = vector.load %arg10[%c0_32, %c0_33] : memref<128x128xf32, #tpu.memory_space<vmem>>, vector<128x128xf32>
    %cst_34 = arith.constant dense<0.000000e+00> : vector<8x128xf32>
    %74 = tpu.matmul %72, %73, %cst_34 {dimension_numbers = #tpu.dot_dimension_numbers<[1], [0], [0], [1], [0, 0, 1, 1], [], []>} : vector<8x128xf32>, vector<128x128xf32>, vector<8x128xf32> -> vector<8x128xf32>
    %c0_35 = arith.constant 0 : index
    %c0_36 = arith.constant 0 : index
    %75 = vector.load %arg11[%c0_35, %c0_36] : memref<1x128xf32, #tpu.memory_space<vmem>>, vector<1x128xf32>
    %76 = vector.broadcast %75 : vector<1x128xf32> to vector<8x128xf32>
    %77 = arith.addf %74, %76 : vector<8x128xf32>
    %c0_37 = arith.constant 0 : index
    %c0_38 = arith.constant 0 : index
    %78 = vector.load %arg12[%c0_37, %c0_38] : memref<8x128xf32, #tpu.memory_space<vmem>>, vector<8x128xf32>
    tpu.vector_store %arg12[%c0_37, %c0_38], %77 {strides = array<i32>} : memref<8x128xf32, #tpu.memory_space<vmem>>, vector<8x128xf32>,
    return
  }
  func.func @transform_0(%arg0: i32) -> (i32, i32) {
    %c0_i32 = arith.constant 0 : i32
    %c0_i32_0 = arith.constant 0 : i32
    return %arg0, %c0_i32 : i32, i32
  }
  func.func @transform_1(%arg0: i32) -> (i32, i32) {
    %c0_i32 = arith.constant 0 : i32
    %c0_i32_0 = arith.constant 0 : i32
    %c0_i32_1 = arith.constant 0 : i32
    return %c0_i32, %c0_i32_0 : i32, i32
  }
  func.func @transform_2(%arg0: i32) -> (i32, i32) {
    %c0_i32 = arith.constant 0 : i32
    %c0_i32_0 = arith.constant 0 : i32
    %c0_i32_1 = arith.constant 0 : i32
    return %c0_i32, %c0_i32_0 : i32, i32
  }
  func.func @transform_3(%arg0: i32) -> (i32, i32) {
    %c0_i32 = arith.constant 0 : i32
    %c0_i32_0 = arith.constant 0 : i32
    %c0_i32_1 = arith.constant 0 : i32
    return %c0_i32, %c0_i32_0 : i32, i32
  }
  func.func @transform_4(%arg0: i32) -> (i32, i32) {
    %c0_i32 = arith.constant 0 : i32
    %c0_i32_0 = arith.constant 0 : i32
    %c0_i32_1 = arith.constant 0 : i32
    return %c0_i32, %c0_i32_0 : i32, i32
  }
  func.func @transform_5(%arg0: i32) -> (i32, i32) {
    %c0_i32 = arith.constant 0 : i32
    %c0_i32_0 = arith.constant 0 : i32
    %c0_i32_1 = arith.constant 0 : i32
    return %c0_i32, %c0_i32_0 : i32, i32
  }
  func.func @transform_6(%arg0: i32) -> (i32, i32) {
    %c0_i32 = arith.constant 0 : i32
    %c0_i32_0 = arith.constant 0 : i32
    %c0_i32_1 = arith.constant 0 : i32
    return %c0_i32, %c0_i32_0 : i32, i32
  }
  func.func @transform_7(%arg0: i32) -> (i32, i32) {
    %c0_i32 = arith.constant 0 : i32
    %c0_i32_0 = arith.constant 0 : i32
    %c0_i32_1 = arith.constant 0 : i32
    return %c0_i32, %c0_i32_0 : i32, i32
  }
  func.func @transform_8(%arg0: i32) -> (i32, i32) {
    %c0_i32 = arith.constant 0 : i32
    %c0_i32_0 = arith.constant 0 : i32
    %c0_i32_1 = arith.constant 0 : i32
    return %c0_i32, %c0_i32_0 : i32, i32
  }
  func.func @transform_9(%arg0: i32) -> (i32, i32) {
    %c0_i32 = arith.constant 0 : i32
    %c0_i32_0 = arith.constant 0 : i32
    %c0_i32_1 = arith.constant 0 : i32
    return %c0_i32, %c0_i32_0 : i32, i32
  }
  func.func @transform_10(%arg0: i32) -> (i32, i32) {
    %c0_i32 = arith.constant 0 : i32
    %c0_i32_0 = arith.constant 0 : i32
    %c0_i32_1 = arith.constant 0 : i32
    return %c0_i32, %c0_i32_0 : i32, i32
  }
  func.func @transform_11(%arg0: i32) -> (i32, i32) {
    %c0_i32 = arith.constant 0 : i32
    %c0_i32_0 = arith.constant 0 : i32
    return %arg0, %c0_i32 : i32, i32
  }
}

</mosaic_0001>

<llo_original>
// kernel: tpu_custom_call.1
$region0: #{tpu_custom_call.1}
  #allocation0 [shape = 'u32[]', space=smem, size = 0x4, offset = 0x4, fixed_abs, tag = 'smem constant byte address 0x4 - core index']
  #allocation1 [shape = 'u32[144,128]{1,0:T(1,128)}', space=vmem, size = 0x12000, scoped, tag = 'internal scratch']
  %s0 = inlined_call_operand.hbm [shape: f32[16,128], index: 0, kind: input, shape index: {}]
  %s1 = inlined_call_operand.hbm [shape: f32[128,128], index: 1, kind: input, shape index: {}]
  %s2 = inlined_call_operand.vmem [shape: f32[1,128], index: 2, kind: input, shape index: {}]
  %s3 = inlined_call_operand.vmem [shape: f32[1,128], index: 3, kind: input, shape index: {}]
  %s4 = inlined_call_operand.vmem [shape: f32[1,128], index: 4, kind: input, shape index: {}]
  %s5 = inlined_call_operand.hbm [shape: f32[128,128], index: 5, kind: input, shape index: {}]
  %s6 = inlined_call_operand.vmem [shape: f32[1,128], index: 6, kind: input, shape index: {}]
  %s7 = inlined_call_operand.vmem [shape: f32[1,128], index: 7, kind: input, shape index: {}]
  %s8 = inlined_call_operand.vmem [shape: f32[1,128], index: 8, kind: input, shape index: {}]
  %s9 = inlined_call_operand.hbm [shape: f32[128,128], index: 9, kind: input, shape index: {}]
  %s10 = inlined_call_operand.vmem [shape: f32[1,128], index: 10, kind: input, shape index: {}]
  %s11 = inlined_call_operand.hbm [shape: f32[16,128], index: 11, kind: output, shape index: {}]
  %s12 = sld [smem:[#allocation0]]
  $region93: #{tpu_custom_call.1} parent=0
    _
  %s14 = ssub.s32 1, %s12
  %s15 = scalar_select 0, %s14, %s12
  $region1: #{tpu_custom_call.1} parent=0
    #allocation2 [shape = 'u8[8192]{0}', space=vmem, size = 0x2000, scoped, tag = 'input window, operand 0']
    #allocation3 [shape = 's32[2]{0}', space=sflag, size = 0x8, scoped, tag = 'scoped memory for tpu_custom_call.1']
    #allocation4 [shape = 's32[2]{0}', space=sflag, size = 0x8, scoped, tag = 'scoped memory for tpu_custom_call.1']
    #allocation5 [shape = 'u8[65536]{0}', space=vmem, size = 0x10000, scoped, tag = 'input window, operand 1, single buffered']
    #allocation6 [shape = 's32[1]{0}', space=sflag, size = 0x4, scoped, tag = 'scoped memory for tpu_custom_call.1']
    #allocation7 [shape = 'u8[65536]{0}', space=vmem, size = 0x10000, scoped, tag = 'input window, operand 5, single buffered']
    #allocation8 [shape = 'u8[65536]{0}', space=vmem, size = 0x10000, scoped, tag = 'input window, operand 9, single buffered']
    #allocation9 [shape = 's32[1]{0}', space=sflag, size = 0x4, scoped, tag = 'scoped memory for tpu_custom_call.1']
    #allocation10 [shape = 'u8[8192]{0}', space=vmem, size = 0x2000, scoped, tag = 'output window, operand 0']
    %16 = vsyncpa [#allocation3], 0
    %s17 = scalar_lea.sflag [#allocation3], 1
    %18 = vsyncpa %s17, 0
    %19 = vsyncpa [#allocation6], 0
    %20 = vsyncpa [#allocation9], 0
    %21 = vsyncpa [#allocation4], 0
    %s22 = scalar_lea.sflag [#allocation4], 1
    %23 = vsyncpa %s22, 0
    loop: start=0, step=1, limit=4
    $region2: #{tpu_custom_call.1} parent=1 // loop_pre_header
      _
    $region3: #{tpu_custom_call.1} parent=1 // loop_header
      %s25 = sphi 0, %s29
      %p26 = scmp.ge.s32.totalorder %s25, 4
      %s35 = sphi 0, %s37
      %s38 = sphi 0, %s35
      %s39 = sphi 0, %s38
      %s55 = sphi 0, %s39
      %s59 = sphi 0, %s59
      %s61 = sphi 0, %s59
      %s62 = sphi 0, %s61
      %s76 = sphi 0, %s62
      %s80 = sphi 0, %s80
      %s82 = sphi 0, %s80
      %s83 = sphi 0, %s82
      %s97 = sphi 0, %s83
      %s101 = sphi 0, %s101
      %s103 = sphi 0, %s101
      %s104 = sphi 0, %s103
      %s118 = sphi 0, %s104
      %s122 = sphi 0, %s122
      %s124 = sphi 0, %s122
      %s125 = sphi 0, %s124
      %s139 = sphi 0, %s125
      %s143 = sphi 0, %s143
      %s145 = sphi 0, %s143
      %s146 = sphi 0, %s145
      %s160 = sphi 0, %s146
      %s164 = sphi 0, %s164
      %s166 = sphi 0, %s164
      %s167 = sphi 0, %s166
      %s181 = sphi 0, %s167
      %s185 = sphi 0, %s185
      %s187 = sphi 0, %s185
      %s188 = sphi 0, %s187
      %s202 = sphi 0, %s188
      %s206 = sphi 0, %s206
      %s208 = sphi 0, %s206
      %s209 = sphi 0, %s208
      %s223 = sphi 0, %s209
      %s227 = sphi 0, %s227
      %s229 = sphi 0, %s227
      %s230 = sphi 0, %s229
      %s244 = sphi 0, %s230
      %s248 = sphi 0, %s248
      %s250 = sphi 0, %s248
      %s251 = sphi 0, %s250
      %s265 = sphi 0, %s251
      %s271 = sphi 0, %s273
      %s274 = sphi 0, %s271
      %s275 = sphi 0, %s274
      %s291 = sphi 0, %s275
    $region4: #{tpu_custom_call.1} parent=1 // loop_header_branch
      %28 = sbr.rel (%p26) target = $region8
    $region5: #{tpu_custom_call.1} parent=1 // loop_body
      %s30 = ssub.s32 %s25, 1
      %s31 = ssub.s32 %s25, 2
      %s32 = sadd.s32 %s25, 1
      %s33 = ssub.s32 %s25, %s32
      %p34 = scmp.eq.s32.totalorder %s33, 0
      %s36 = sadd.s32 %s35, 1
      %s37 = scalar_select %p34, %s35, %s36
      %p40 = pneg %p34
      %p41 = scmp.eq.s32.totalorder %s25, 1
      %p42 = por %p40, %p41
      %p43 = scmp.ne.s32.totalorder %s35, %s38
      %p44 = scmp.eq.s32.totalorder %s25, 0
      %p45 = por %p43, %p44
      %p46 = scmp.ne.s32.totalorder %s35, %s38
      %p47 = scmp.eq.s32.totalorder %s30, 1
      %p48 = por %p46, %p47
      %p49 = scmp.ne.s32.totalorder %s38, %s39
      %p50 = scmp.eq.s32.totalorder %s30, 0
      %p51 = por %p49, %p50
      %p52 = scmp.ne.s32.totalorder %s38, %s39
      %p53 = scmp.eq.s32.totalorder %s31, 1
      %p54 = por %p52, %p53
      %p56 = scmp.ne.s32.totalorder %s39, %s55
      %p57 = scmp.eq.s32.totalorder %s31, 0
      %p58 = por %p56, %p57
      %s60 = sadd.s32 %s59, 1
      %p63 = scmp.eq.s32.totalorder %s25, 1
      %p64 = scmp.ne.s32.totalorder %s59, %s61
      %p65 = scmp.eq.s32.totalorder %s25, 0
      %p66 = por %p64, %p65
      %p67 = scmp.ne.s32.totalorder %s59, %s61
      %p68 = scmp.eq.s32.totalorder %s30, 1
      %p69 = por %p67, %p68
      %p70 = scmp.ne.s32.totalorder %s61, %s62
      %p71 = scmp.eq.s32.totalorder %s30, 0
      %p72 = por %p70, %p71
      %p73 = scmp.ne.s32.totalorder %s61, %s62
      %p74 = scmp.eq.s32.totalorder %s31, 1
      %p75 = por %p73, %p74
      %p77 = scmp.ne.s32.totalorder %s62, %s76
      %p78 = scmp.eq.s32.totalorder %s31, 0
      %p79 = por %p77, %p78
      %s81 = sadd.s32 %s80, 1
      %p84 = scmp.eq.s32.totalorder %s25, 1
      %p85 = scmp.ne.s32.totalorder %s80, %s82
      %p86 = scmp.eq.s32.totalorder %s25, 0
      %p87 = por %p85, %p86
      %p88 = scmp.ne.s32.totalorder %s80, %s82
      %p89 = scmp.eq.s32.totalorder %s30, 1
      %p90 = por %p88, %p89
      %p91 = scmp.ne.s32.totalorder %s82, %s83
      %p92 = scmp.eq.s32.totalorder %s30, 0
      %p93 = por %p91, %p92
      %p94 = scmp.ne.s32.totalorder %s82, %s83
      %p95 = scmp.eq.s32.totalorder %s31, 1
      %p96 = por %p94, %p95
      %p98 = scmp.ne.s32.totalorder %s83, %s97
      %p99 = scmp.eq.s32.totalorder %s31, 0
      %p100 = por %p98, %p99
      %s102 = sadd.s32 %s101, 1
      %p105 = scmp.eq.s32.totalorder %s25, 1
      %p106 = scmp.ne.s32.totalorder %s101, %s103
      %p107 = scmp.eq.s32.totalorder %s25, 0
      %p108 = por %p106, %p107
      %p109 = scmp.ne.s32.totalorder %s101, %s103
      %p110 = scmp.eq.s32.totalorder %s30, 1
      %p111 = por %p109, %p110
      %p112 = scmp.ne.s32.totalorder %s103, %s104
      %p113 = scmp.eq.s32.totalorder %s30, 0
      %p114 = por %p112, %p113
      %p115 = scmp.ne.s32.totalorder %s103, %s104
      %p116 = scmp.eq.s32.totalorder %s31, 1
      %p117 = por %p115, %p116
      %p119 = scmp.ne.s32.totalorder %s104, %s118
      %p120 = scmp.eq.s32.totalorder %s31, 0
      %p121 = por %p119, %p120
      %s123 = sadd.s32 %s122, 1
      %p126 = scmp.eq.s32.totalorder %s25, 1
      %p127 = scmp.ne.s32.totalorder %s122, %s124
      %p128 = scmp.eq.s32.totalorder %s25, 0
      %p129 = por %p127, %p128
      %p130 = scmp.ne.s32.totalorder %s122, %s124
      %p131 = scmp.eq.s32.totalorder %s30, 1
      %p132 = por %p130, %p131
      %p133 = scmp.ne.s32.totalorder %s124, %s125
      %p134 = scmp.eq.s32.totalorder %s30, 0
      %p135 = por %p133, %p134
      %p136 = scmp.ne.s32.totalorder %s124, %s125
      %p137 = scmp.eq.s32.totalorder %s31, 1
      %p138 = por %p136, %p137
      %p140 = scmp.ne.s32.totalorder %s125, %s139
      %p141 = scmp.eq.s32.totalorder %s31, 0
      %p142 = por %p140, %p141
      %s144 = sadd.s32 %s143, 1
      %p147 = scmp.eq.s32.totalorder %s25, 1
      %p148 = scmp.ne.s32.totalorder %s143, %s145
      %p149 = scmp.eq.s32.totalorder %s25, 0
      %p150 = por %p148, %p149
      %p151 = scmp.ne.s32.totalorder %s143, %s145
      %p152 = scmp.eq.s32.totalorder %s30, 1
      %p153 = por %p151, %p152
      %p154 = scmp.ne.s32.totalorder %s145, %s146
      %p155 = scmp.eq.s32.totalorder %s30, 0
      %p156 = por %p154, %p155
      %p157 = scmp.ne.s32.totalorder %s145, %s146
      %p158 = scmp.eq.s32.totalorder %s31, 1
      %p159 = por %p157, %p158
      %p161 = scmp.ne.s32.totalorder %s146, %s160
      %p162 = scmp.eq.s32.totalorder %s31, 0
      %p163 = por %p161, %p162
      %s165 = sadd.s32 %s164, 1
      %p168 = scmp.eq.s32.totalorder %s25, 1
      %p169 = scmp.ne.s32.totalorder %s164, %s166
      %p170 = scmp.eq.s32.totalorder %s25, 0
      %p171 = por %p169, %p170
      %p172 = scmp.ne.s32.totalorder %s164, %s166
      %p173 = scmp.eq.s32.totalorder %s30, 1
      %p174 = por %p172, %p173
      %p175 = scmp.ne.s32.totalorder %s166, %s167
      %p176 = scmp.eq.s32.totalorder %s30, 0
      %p177 = por %p175, %p176
      %p178 = scmp.ne.s32.totalorder %s166, %s167
      %p179 = scmp.eq.s32.totalorder %s31, 1
      %p180 = por %p178, %p179
      %p182 = scmp.ne.s32.totalorder %s167, %s181
      %p183 = scmp.eq.s32.totalorder %s31, 0
      %p184 = por %p182, %p183
      %s186 = sadd.s32 %s185, 1
      %p189 = scmp.eq.s32.totalorder %s25, 1
      %p190 = scmp.ne.s32.totalorder %s185, %s187
      %p191 = scmp.eq.s32.totalorder %s25, 0
      %p192 = por %p190, %p191
      %p193 = scmp.ne.s32.totalorder %s185, %s187
      %p194 = scmp.eq.s32.totalorder %s30, 1
      %p195 = por %p193, %p194
      %p196 = scmp.ne.s32.totalorder %s187, %s188
      %p197 = scmp.eq.s32.totalorder %s30, 0
      %p198 = por %p196, %p197
      %p199 = scmp.ne.s32.totalorder %s187, %s188
      %p200 = scmp.eq.s32.totalorder %s31, 1
      %p201 = por %p199, %p200
      %p203 = scmp.ne.s32.totalorder %s188, %s202
      %p204 = scmp.eq.s32.totalorder %s31, 0
      %p205 = por %p203, %p204
      %s207 = sadd.s32 %s206, 1
      %p210 = scmp.eq.s32.totalorder %s25, 1
      %p211 = scmp.ne.s32.totalorder %s206, %s208
      %p212 = scmp.eq.s32.totalorder %s25, 0
      %p213 = por %p211, %p212
      %p214 = scmp.ne.s32.totalorder %s206, %s208
      %p215 = scmp.eq.s32.totalorder %s30, 1
      %p216 = por %p214, %p215
      %p217 = scmp.ne.s32.totalorder %s208, %s209
      %p218 = scmp.eq.s32.totalorder %s30, 0
      %p219 = por %p217, %p218
      %p220 = scmp.ne.s32.totalorder %s208, %s209
      %p221 = scmp.eq.s32.totalorder %s31, 1
      %p222 = por %p220, %p221
      %p224 = scmp.ne.s32.totalorder %s209, %s223
      %p225 = scmp.eq.s32.totalorder %s31, 0
      %p226 = por %p224, %p225
      %s228 = sadd.s32 %s227, 1
      %p231 = scmp.eq.s32.totalorder %s25, 1
      %p232 = scmp.ne.s32.totalorder %s227, %s229
      %p233 = scmp.eq.s32.totalorder %s25, 0
      %p234 = por %p232, %p233
      %p235 = scmp.ne.s32.totalorder %s227, %s229
      %p236 = scmp.eq.s32.totalorder %s30, 1
      %p237 = por %p235, %p236
      %p238 = scmp.ne.s32.totalorder %s229, %s230
      %p239 = scmp.eq.s32.totalorder %s30, 0
      %p240 = por %p238, %p239
      %p241 = scmp.ne.s32.totalorder %s229, %s230
      %p242 = scmp.eq.s32.totalorder %s31, 1
      %p243 = por %p241, %p242
      %p245 = scmp.ne.s32.totalorder %s230, %s244
      %p246 = scmp.eq.s32.totalorder %s31, 0
      %p247 = por %p245, %p246
      %s249 = sadd.s32 %s248, 1
      %p252 = scmp.eq.s32.totalorder %s25, 1
      %p253 = scmp.ne.s32.totalorder %s248, %s250
      %p254 = scmp.eq.s32.totalorder %s25, 0
      %p255 = por %p253, %p254
      %p256 = scmp.ne.s32.totalorder %s248, %s250
      %p257 = scmp.eq.s32.totalorder %s30, 1
      %p258 = por %p256, %p257
      %p259 = scmp.ne.s32.totalorder %s250, %s251
      %p260 = scmp.eq.s32.totalorder %s30, 0
      %p261 = por %p259, %p260
      %p262 = scmp.ne.s32.totalorder %s250, %s251
      %p263 = scmp.eq.s32.totalorder %s31, 1
      %p264 = por %p262, %p263
      %p266 = scmp.ne.s32.totalorder %s251, %s265
      %p267 = scmp.eq.s32.totalorder %s31, 0
      %p268 = por %p266, %p267
      %s269 = ssub.s32 %s25, %s32
      %p270 = scmp.eq.s32.totalorder %s269, 0
      %s272 = sadd.s32 %s271, 1
      %s273 = scalar_select %p270, %s271, %s272
      %p276 = pneg %p270
      %p277 = scmp.eq.s32.totalorder %s25, 1
      %p278 = por %p276, %p277
      %p279 = scmp.ne.s32.totalorder %s271, %s274
      %p280 = scmp.eq.s32.totalorder %s25, 0
      %p281 = por %p279, %p280
      %p282 = scmp.ne.s32.totalorder %s271, %s274
      %p283 = scmp.eq.s32.totalorder %s30, 1
      %p284 = por %p282, %p283
      %p285 = scmp.ne.s32.totalorder %s274, %s275
      %p286 = scmp.eq.s32.totalorder %s30, 0
      %p287 = por %p285, %p286
      %p288 = scmp.ne.s32.totalorder %s274, %s275
      %p289 = scmp.eq.s32.totalorder %s31, 1
      %p290 = por %p288, %p289
      %p292 = scmp.ne.s32.totalorder %s275, %s291
      %p293 = scmp.eq.s32.totalorder %s31, 0
      %p294 = por %p292, %p293
      %p295 = scmp.le.s32.totalorder 1, %s25
      %p296 = scmp.lt.s32.totalorder %s25, 3
      %p297 = pnand %p295, %p296
      %p298 = pneg %p297
      // Predicated region
      $region9: #{tpu_custom_call.1} parent=5 // pred_check
        _
      $region10: #{tpu_custom_call.1} parent=5 // pred_check_branch
        %300 = sbr.rel (%p297) target = $region12
      $region11: #{tpu_custom_call.1} parent=5 // pred_region
        %s301 = ssub.s32 %s25, 1
        // Predicated region
        $region13: #{tpu_custom_call.1} parent=11 // pred_check
          %p302 = pneg %p72
        $region14: #{tpu_custom_call.1} parent=11 // pred_check_branch
          %304 = sbr.rel (%p302) target = $region16
        $region15: #{tpu_custom_call.1} parent=11 // pred_region
          %s306 = ssub.s32 2048, 2048
          %307 = vsyncadd [#allocation6], %s306
          %s308 = sshll.u32 [#allocation5], 4
          %s309 = int_to_ptr.vmem [resolvable:$true] %s308
          %314 = dma.hbm_to_vmem [thread:$0]  %s1, 2048, %s309, [#allocation6], 128, 128, 8
        $region16: #{tpu_custom_call.1} parent=11 // pred_fallthru
          _
        // Predicated region
        $region17: #{tpu_custom_call.1} parent=11 // pred_check
          %p315 = pneg %p93
        $region18: #{tpu_custom_call.1} parent=11 // pred_check_branch
          %317 = sbr.rel (%p315) target = $region20
        $region19: #{tpu_custom_call.1} parent=11 // pred_region
          _
        $region20: #{tpu_custom_call.1} parent=11 // pred_fallthru
          _
        // Predicated region
        $region21: #{tpu_custom_call.1} parent=11 // pred_check
          %p318 = pneg %p114
        $region22: #{tpu_custom_call.1} parent=11 // pred_check_branch
          %320 = sbr.rel (%p318) target = $region24
        $region23: #{tpu_custom_call.1} parent=11 // pred_region
          _
        $region24: #{tpu_custom_call.1} parent=11 // pred_fallthru
          _
        // Predicated region
        $region25: #{tpu_custom_call.1} parent=11 // pred_check
          %p321 = pneg %p135
        $region26: #{tpu_custom_call.1} parent=11 // pred_check_branch
          %323 = sbr.rel (%p321) target = $region28
        $region27: #{tpu_custom_call.1} parent=11 // pred_region
          _
        $region28: #{tpu_custom_call.1} parent=11 // pred_fallthru
          _
        // Predicated region
        $region29: #{tpu_custom_call.1} parent=11 // pred_check
          %p324 = pneg %p156
        $region30: #{tpu_custom_call.1} parent=11 // pred_check_branch
          %326 = sbr.rel (%p324) target = $region32
        $region31: #{tpu_custom_call.1} parent=11 // pred_region
          %s328 = ssub.s32 2048, 2048
          %329 = vsyncadd [#allocation6], %s328
          %s330 = sshll.u32 [#allocation7], 4
          %s331 = int_to_ptr.vmem [resolvable:$true] %s330
          %336 = dma.hbm_to_vmem [thread:$0]  %s5, 2048, %s331, [#allocation6], 128, 128, 8
        $region32: #{tpu_custom_call.1} parent=11 // pred_fallthru
          _
        // Predicated region
        $region33: #{tpu_custom_call.1} parent=11 // pred_check
          %p337 = pneg %p177
        $region34: #{tpu_custom_call.1} parent=11 // pred_check_branch
          %339 = sbr.rel (%p337) target = $region36
        $region35: #{tpu_custom_call.1} parent=11 // pred_region
          _
        $region36: #{tpu_custom_call.1} parent=11 // pred_fallthru
          _
        // Predicated region
        $region37: #{tpu_custom_call.1} parent=11 // pred_check
          %p340 = pneg %p198
        $region38: #{tpu_custom_call.1} parent=11 // pred_check_branch
          %342 = sbr.rel (%p340) target = $region40
        $region39: #{tpu_custom_call.1} parent=11 // pred_region
          _
        $region40: #{tpu_custom_call.1} parent=11 // pred_fallthru
          _
        // Predicated region
        $region41: #{tpu_custom_call.1} parent=11 // pred_check
          %p343 = pneg %p219
        $region42: #{tpu_custom_call.1} parent=11 // pred_check_branch
          %345 = sbr.rel (%p343) target = $region44
        $region43: #{tpu_custom_call.1} parent=11 // pred_region
          _
        $region44: #{tpu_custom_call.1} parent=11 // pred_fallthru
          _
        // Predicated region
        $region45: #{tpu_custom_call.1} parent=11 // pred_check
          %p346 = pneg %p240
        $region46: #{tpu_custom_call.1} parent=11 // pred_check_branch
          %348 = sbr.rel (%p346) target = $region48
        $region47: #{tpu_custom_call.1} parent=11 // pred_region
          %s350 = ssub.s32 2048, 2048
          %351 = vsyncadd [#allocation9], %s350
          %s352 = sshll.u32 [#allocation8], 4
          %s353 = int_to_ptr.vmem [resolvable:$true] %s352
          %358 = dma.hbm_to_vmem [thread:$0]  %s9, 2048, %s353, [#allocation9], 128, 128, 8
        $region48: #{tpu_custom_call.1} parent=11 // pred_fallthru
          _
        // Predicated region
        $region49: #{tpu_custom_call.1} parent=11 // pred_check
          %p359 = pneg %p261
        $region50: #{tpu_custom_call.1} parent=11 // pred_check_branch
          %361 = sbr.rel (%p359) target = $region52
        $region51: #{tpu_custom_call.1} parent=11 // pred_region
          _
        $region52: #{tpu_custom_call.1} parent=11 // pred_fallthru
          _
      $region12: #{tpu_custom_call.1} parent=5 // pred_fallthru
        _
      %p362 = scmp.lt.s32.totalorder %s25, 2
      // Predicated region
      $region53: #{tpu_custom_call.1} parent=5 // pred_check
        %p363 = pneg %p362
      $region54: #{tpu_custom_call.1} parent=5 // pred_check_branch
        %365 = sbr.rel (%p363) target = $region56
      $region55: #{tpu_custom_call.1} parent=5 // pred_region
        // Predicated region
        $region57: #{tpu_custom_call.1} parent=55 // pred_check
          %p366 = pneg %p45
        $region58: #{tpu_custom_call.1} parent=55 // pred_check_branch
          %368 = sbr.rel (%p366) target = $region60
        $region59: #{tpu_custom_call.1} parent=55 // pred_region
          %s369 = sand.u32 %s35, 1
          %s370 = scalar_lea.sflag [#allocation3], %s369
          %s371 = sand.u32 %s35, 1
          %s372 = smul.addr %s371, 8
          %s373 = scalar_lea.vmem [#allocation2], %s372
          %s375 = ssub.s32 128, 128
          %376 = vsyncadd %s370, %s375
          %s377 = smul.addr %s25, 128
          %s378 = scalar_lea.hbm %s0, %s377
          %s380 = sshll.u32 %s373, 4
          %s381 = int_to_ptr.vmem [resolvable:$true] %s380
          %383 = dma.hbm_to_vmem [thread:$0]  %s378, 128, %s381, %s370
        $region60: #{tpu_custom_call.1} parent=55 // pred_fallthru
          _
      $region56: #{tpu_custom_call.1} parent=5 // pred_fallthru
        _
      %p384 = scmp.le.s32.totalorder 1, %s25
      %p385 = scmp.lt.s32.totalorder %s25, 3
      %p386 = pnand %p384, %p385
      %p387 = pneg %p386
      // Predicated region
      $region61: #{tpu_custom_call.1} parent=5 // pred_check
        _
      $region62: #{tpu_custom_call.1} parent=5 // pred_check_branch
        %389 = sbr.rel (%p386) target = $region64
      $region63: #{tpu_custom_call.1} parent=5 // pred_region
        %s390 = ssub.s32 %s25, 1
        %s391 = sand.u32 %s38, 1
        %s392 = scalar_lea.sflag [#allocation3], %s391
        %s393 = sand.u32 %s38, 1
        %s394 = smul.addr %s393, 8
        %s395 = scalar_lea.vmem [#allocation2], %s394
        // Predicated region
        $region65: #{tpu_custom_call.1} parent=63 // pred_check
          %p396 = pneg %p51
        $region66: #{tpu_custom_call.1} parent=63 // pred_check_branch
          %398 = sbr.rel (%p396) target = $region68
        $region67: #{tpu_custom_call.1} parent=63 // pred_region
          %399 = dma.done %s392, 128
        $region68: #{tpu_custom_call.1} parent=63 // pred_fallthru
          _
        // Predicated region
        $region69: #{tpu_custom_call.1} parent=63 // pred_check
          %p400 = pneg %p72
        $region70: #{tpu_custom_call.1} parent=63 // pred_check_branch
          %402 = sbr.rel (%p400) target = $region72
        $region71: #{tpu_custom_call.1} parent=63 // pred_region
          %403 = dma.done [#allocation6], 2048
        $region72: #{tpu_custom_call.1} parent=63 // pred_fallthru
          _
        // Predicated region
        $region73: #{tpu_custom_call.1} parent=63 // pred_check
          %p404 = pneg %p156
        $region74: #{tpu_custom_call.1} parent=63 // pred_check_branch
          %406 = sbr.rel (%p404) target = $region76
        $region75: #{tpu_custom_call.1} parent=63 // pred_region
          %407 = dma.done [#allocation6], 2048
        $region76: #{tpu_custom_call.1} parent=63 // pred_fallthru
          _
        // Predicated region
        $region77: #{tpu_custom_call.1} parent=63 // pred_check
          %p408 = pneg %p240
        $region78: #{tpu_custom_call.1} parent=63 // pred_check_branch
          %410 = sbr.rel (%p408) target = $region80
        $region79: #{tpu_custom_call.1} parent=63 // pred_region
          %411 = dma.done [#allocation9], 2048
        $region80: #{tpu_custom_call.1} parent=63 // pred_fallthru
          _
        %s412 = sand.u32 %s38, 1
        %s413 = scalar_lea.sflag [#allocation3], %s412
        %s414 = sand.u32 %s38, 1
        %s415 = smul.addr %s414, 8
        %s416 = scalar_lea.vmem [#allocation2], %s415
        %p417 = pneg %p51
        %p418 = pneg %p48
        %p419 = pneg %p72
        %p420 = pneg %p69
        %p421 = pneg %p93
        %p422 = pneg %p90
        %p423 = pneg %p114
        %p424 = pneg %p111
        %p425 = pneg %p135
        %p426 = pneg %p132
        %p427 = pneg %p156
        %p428 = pneg %p153
        %p429 = pneg %p177
        %p430 = pneg %p174
        %p431 = pneg %p198
        %p432 = pneg %p195
        %p433 = pneg %p219
        %p434 = pneg %p216
        %p435 = pneg %p240
        %p436 = pneg %p237
        %p437 = pneg %p261
        %p438 = pneg %p258
        %p439 = pneg %p287
        %p440 = pneg %p284
        %s441 = sand.u32 %s274, 1
        %s442 = scalar_lea.sflag [#allocation4], %s441
        %s443 = sand.u32 %s274, 1
        %s444 = smul.addr %s443, 8
        %s445 = scalar_lea.vmem [#allocation10], %s444
        %v446 = vld [vmem:[%s395] sm:$0xff]
        %v447 = vld [vmem:[#allocation5] sm:$0xff]
        %v448 = vld [vmem:[#allocation5 + $0x8] sm:$0xff]
        %v449 = vld [vmem:[#allocation5 + $0x10] sm:$0xff]
        %v450 = vld [vmem:[#allocation5 + $0x18] sm:$0xff]
        %v451 = vld [vmem:[#allocation5 + $0x20] sm:$0xff]
        %v452 = vld [vmem:[#allocation5 + $0x28] sm:$0xff]
        %v453 = vld [vmem:[#allocation5 + $0x30] sm:$0xff]
        %v454 = vld [vmem:[#allocation5 + $0x38] sm:$0xff]
        %v455 = vld [vmem:[#allocation5 + $0x40] sm:$0xff]
        %v456 = vld [vmem:[#allocation5 + $0x48] sm:$0xff]
        %v457 = vld [vmem:[#allocation5 + $0x50] sm:$0xff]
        %v458 = vld [vmem:[#allocation5 + $0x58] sm:$0xff]
        %v459 = vld [vmem:[#allocation5 + $0x60] sm:$0xff]
        %v460 = vld [vmem:[#allocation5 + $0x68] sm:$0xff]
        %v461 = vld [vmem:[#allocation5 + $0x70] sm:$0xff]
        %v462 = vld [vmem:[#allocation5 + $0x78] sm:$0xff]
        %v463 = vld [vmem:[%s2] sm:$0x1]
        %v465 = vlaneseq
        %v466 = vshrl.u32 %v465, 7
        %v467 = vsub.s32 0, %v466
        %v468 = vrot.slane %v463, %v467
        %470 = vmatprep.subr.mxu0 0.0
        %471 = vmatpush1.msra.mxu0 %v462
        %472 = vmatprep.subr.mxu0 0.0
        %473 = vmatpush1.msra.mxu0 %v461
        %474 = vmatprep.subr.mxu0 0.0
        %475 = vmatpush1.msra.mxu0 %v460
        %476 = vmatprep.subr.mxu0 0.0
        %477 = vmatpush1.msra.mxu0 %v459
        %478 = vmatprep.subr.mxu0 0.0
        %479 = vmatpush1.msra.mxu0 %v458
        %480 = vmatprep.subr.mxu0 0.0
        %481 = vmatpush1.msra.mxu0 %v457
        %482 = vmatprep.subr.mxu0 0.0
        %483 = vmatpush1.msra.mxu0 %v456
        %484 = vmatprep.subr.mxu0 0.0
        %485 = vmatpush1.msra.mxu0 %v455
        %486 = vmatprep.subr.mxu0 0.0
        %487 = vmatpush1.msra.mxu0 %v454
        %488 = vmatprep.subr.mxu0 0.0
        %489 = vmatpush1.msra.mxu0 %v453
        %490 = vmatprep.subr.mxu0 0.0
        %491 = vmatpush1.msra.mxu0 %v452
        %492 = vmatprep.subr.mxu0 0.0
        %493 = vmatpush1.msra.mxu0 %v451
        %494 = vmatprep.subr.mxu0 0.0
        %495 = vmatpush1.msra.mxu0 %v450
        %496 = vmatprep.subr.mxu0 0.0
        %497 = vmatpush1.msra.mxu0 %v449
        %498 = vmatprep.subr.mxu0 0.0
        %499 = vmatpush1.msra.mxu0 %v448
        %500 = vmatprep.subr.mxu0 0.0
        %501 = vmatpush1.msra.mxu0 %v447
        %502 = vmatprep.subr.mxu0 0.0
        %503 = vmatpush2.msra.mxu0 0.0
        %504 = vmatprep.subr.mxu0 0.0
        %505 = vmatpush2.msra.mxu0 0.0
        %506 = vmatprep.subr.mxu0 0.0
        %507 = vmatpush2.msra.mxu0 0.0
        %508 = vmatprep.subr.mxu0 0.0
        %509 = vmatpush2.msra.mxu0 0.0
        %510 = vmatprep.subr.mxu0 0.0
        %511 = vmatpush2.msra.mxu0 0.0
        %512 = vmatprep.subr.mxu0 0.0
        %513 = vmatpush2.msra.mxu0 0.0
        %514 = vmatprep.subr.mxu0 0.0
        %515 = vmatpush2.msra.mxu0 0.0
        %516 = vmatprep.subr.mxu0 0.0
        %517 = vmatpush2.msra.mxu0 0.0
        %518 = vmatprep.subr.mxu0 0.0
        %519 = vmatpush2.msra.mxu0 0.0
        %520 = vmatprep.subr.mxu0 0.0
        %521 = vmatpush2.msra.mxu0 0.0
        %522 = vmatprep.subr.mxu0 0.0
        %523 = vmatpush2.msra.mxu0 0.0
        %524 = vmatprep.subr.mxu0 0.0
        %525 = vmatpush2.msra.mxu0 0.0
        %526 = vmatprep.subr.mxu0 0.0
        %527 = vmatpush2.msra.mxu0 0.0
        %528 = vmatprep.subr.mxu0 0.0
        %529 = vmatpush2.msra.mxu0 0.0
        %530 = vmatprep.subr.mxu0 0.0
        %531 = vmatpush2.msra.mxu0 0.0
        %532 = vmatprep.subr.mxu0 0.0
        %533 = vmatpush2.msra.mxu0 0.0
        %534 = vmatprep.mubr.f32.mxu0 0.0
        %535 = vmatmul.mubr.f32.gmra.mxu0 %v446
        %v536 = vpop.f32.mrf.mxu0
        %v537 = vadd.f32 %v468, %v536
        %v538 = vpop.f32.mrf.mxu0
        %539 = vdwg.mxu0
        %540 = vadd.xlane.f32.xlu0 %v537
        %v541 = vpop.xlane.xlu0 %540
        %v542 = vmul.f32 %v541, 0.015625
        %v543 = vsub.f32 %v537, %v542
        %v544 = vlaneseq
        %v545 = vand.u32 %v544, 127
        %vm546 = vcmp.lt.s32.totalorder %v545, 64
        %v547 = vsel %vm546, 1, 0
        %vm548 = vcmp.eq.s32.totalorder %v547, 1
        %v549 = vsel %vm548, %v543, 0.0
        %v550 = vmul.f32 %v549, %v549
        %551 = vadd.xlane.f32.xlu0 %v550
        %v552 = vpop.xlane.xlu0 %551
        %v553 = vmul.f32 %v552, 0.015625
        %v554 = vadd.f32 %v553, 1e-05
        %v555 = vrsqrt.pop %v554
        %v556 = vmul.f32 %v549, %v555
        %v557 = vld [vmem:[%s3] sm:$0x1]
        %v559 = vlaneseq
        %v560 = vshrl.u32 %v559, 7
        %v561 = vsub.s32 0, %v560
        %v562 = vrot.slane %v557, %v561
        %v564 = vmul.f32 %v556, %v562
        %v565 = vld [vmem:[%s4] sm:$0x1]
        %v567 = vlaneseq
        %v568 = vshrl.u32 %v567, 7
        %v569 = vsub.s32 0, %v568
        %v570 = vrot.slane %v565, %v569
        %v572 = vadd.f32 %v564, %v570
        %v573 = vmax.f32 %v572, 0.0
        %v574 = vld [vmem:[#allocation7] sm:$0xff]
        %v575 = vld [vmem:[#allocation7 + $0x8] sm:$0xff]
        %v576 = vld [vmem:[#allocation7 + $0x10] sm:$0xff]
        %v577 = vld [vmem:[#allocation7 + $0x18] sm:$0xff]
        %v578 = vld [vmem:[#allocation7 + $0x20] sm:$0xff]
        %v579 = vld [vmem:[#allocation7 + $0x28] sm:$0xff]
        %v580 = vld [vmem:[#allocation7 + $0x30] sm:$0xff]
        %v581 = vld [vmem:[#allocation7 + $0x38] sm:$0xff]
        %v582 = vld [vmem:[#allocation7 + $0x40] sm:$0xff]
        %v583 = vld [vmem:[#allocation7 + $0x48] sm:$0xff]
        %v584 = vld [vmem:[#allocation7 + $0x50] sm:$0xff]
        %v585 = vld [vmem:[#allocation7 + $0x58] sm:$0xff]
        %v586 = vld [vmem:[#allocation7 + $0x60] sm:$0xff]
        %v587 = vld [vmem:[#allocation7 + $0x68] sm:$0xff]
        %v588 = vld [vmem:[#allocation7 + $0x70] sm:$0xff]
        %v589 = vld [vmem:[#allocation7 + $0x78] sm:$0xff]
        %v590 = vld [vmem:[%s6] sm:$0x1]
        %v592 = vlaneseq
        %v593 = vshrl.u32 %v592, 7
        %v594 = vsub.s32 0, %v593
        %v595 = vrot.slane %v590, %v594
        %597 = vmatprep.subr.mxu0 0.0
        %598 = vmatpush1.msra.mxu0 %v589
        %599 = vmatprep.subr.mxu0 0.0
        %600 = vmatpush1.msra.mxu0 %v588
        %601 = vmatprep.subr.mxu0 0.0
        %602 = vmatpush1.msra.mxu0 %v587
        %603 = vmatprep.subr.mxu0 0.0
        %604 = vmatpush1.msra.mxu0 %v586
        %605 = vmatprep.subr.mxu0 0.0
        %606 = vmatpush1.msra.mxu0 %v585
        %607 = vmatprep.subr.mxu0 0.0
        %608 = vmatpush1.msra.mxu0 %v584
        %609 = vmatprep.subr.mxu0 0.0
        %610 = vmatpush1.msra.mxu0 %v583
        %611 = vmatprep.subr.mxu0 0.0
        %612 = vmatpush1.msra.mxu0 %v582
        %613 = vmatprep.subr.mxu0 0.0
        %614 = vmatpush1.msra.mxu0 %v581
        %615 = vmatprep.subr.mxu0 0.0
        %616 = vmatpush1.msra.mxu0 %v580
        %617 = vmatprep.subr.mxu0 0.0
        %618 = vmatpush1.msra.mxu0 %v579
        %619 = vmatprep.subr.mxu0 0.0
        %620 = vmatpush1.msra.mxu0 %v578
        %621 = vmatprep.subr.mxu0 0.0
        %622 = vmatpush1.msra.mxu0 %v577
        %623 = vmatprep.subr.mxu0 0.0
        %624 = vmatpush1.msra.mxu0 %v576
        %625 = vmatprep.subr.mxu0 0.0
        %626 = vmatpush1.msra.mxu0 %v575
        %627 = vmatprep.subr.mxu0 0.0
        %628 = vmatpush1.msra.mxu0 %v574
        %629 = vmatprep.subr.mxu0 0.0
        %630 = vmatpush2.msra.mxu0 0.0
        %631 = vmatprep.subr.mxu0 0.0
        %632 = vmatpush2.msra.mxu0 0.0
        %633 = vmatprep.subr.mxu0 0.0
        %634 = vmatpush2.msra.mxu0 0.0
        %635 = vmatprep.subr.mxu0 0.0
        %636 = vmatpush2.msra.mxu0 0.0
        %637 = vmatprep.subr.mxu0 0.0
        %638 = vmatpush2.msra.mxu0 0.0
        %639 = vmatprep.subr.mxu0 0.0
        %640 = vmatpush2.msra.mxu0 0.0
        %641 = vmatprep.subr.mxu0 0.0
        %642 = vmatpush2.msra.mxu0 0.0
        %643 = vmatprep.subr.mxu0 0.0
        %644 = vmatpush2.msra.mxu0 0.0
        %645 = vmatprep.subr.mxu0 0.0
        %646 = vmatpush2.msra.mxu0 0.0
        %647 = vmatprep.subr.mxu0 0.0
        %648 = vmatpush2.msra.mxu0 0.0
        %649 = vmatprep.subr.mxu0 0.0
        %650 = vmatpush2.msra.mxu0 0.0
        %651 = vmatprep.subr.mxu0 0.0
        %652 = vmatpush2.msra.mxu0 0.0
        %653 = vmatprep.subr.mxu0 0.0
        %654 = vmatpush2.msra.mxu0 0.0
        %655 = vmatprep.subr.mxu0 0.0
        %656 = vmatpush2.msra.mxu0 0.0
        %657 = vmatprep.subr.mxu0 0.0
        %658 = vmatpush2.msra.mxu0 0.0
        %659 = vmatprep.subr.mxu0 0.0
        %660 = vmatpush2.msra.mxu0 0.0
        %661 = vmatprep.mubr.f32.mxu0 0.0
        %662 = vmatmul.mubr.f32.gmra.mxu0 %v573
        %v663 = vpop.f32.mrf.mxu0
        %v664 = vadd.f32 %v595, %v663
        %v665 = vpop.f32.mrf.mxu0
        %666 = vdwg.mxu0
        %667 = vadd.xlane.f32.xlu0 %v664
        %v668 = vpop.xlane.xlu0 %667
        %v669 = vmul.f32 %v668, 0.020833334
        %v670 = vsub.f32 %v664, %v669
        %vm671 = vcmp.lt.s32.totalorder %v545, 48
        %v672 = vsel %vm671, 1, 0
        %vm673 = vcmp.eq.s32.totalorder %v672, 1
        %v674 = vsel %vm673, %v670, 0.0
        %v675 = vmul.f32 %v674, %v674
        %676 = vadd.xlane.f32.xlu0 %v675
        %v677 = vpop.xlane.xlu0 %676
        %v678 = vmul.f32 %v677, 0.020833334
        %v679 = vadd.f32 %v678, 1e-05
        %v680 = vrsqrt.pop %v679
        %v681 = vmul.f32 %v674, %v680
        %v682 = vld [vmem:[%s7] sm:$0x1]
        %v684 = vlaneseq
        %v685 = vshrl.u32 %v684, 7
        %v686 = vsub.s32 0, %v685
        %v687 = vrot.slane %v682, %v686
        %v689 = vmul.f32 %v681, %v687
        %v690 = vld [vmem:[%s8] sm:$0x1]
        %v692 = vlaneseq
        %v693 = vshrl.u32 %v692, 7
        %v694 = vsub.s32 0, %v693
        %v695 = vrot.slane %v690, %v694
        %v697 = vadd.f32 %v689, %v695
        %v698 = vmax.f32 %v697, 0.0
        %v699 = vld [vmem:[#allocation8] sm:$0xff]
        %v700 = vld [vmem:[#allocation8 + $0x8] sm:$0xff]
        %v701 = vld [vmem:[#allocation8 + $0x10] sm:$0xff]
        %v702 = vld [vmem:[#allocation8 + $0x18] sm:$0xff]
        %v703 = vld [vmem:[#allocation8 + $0x20] sm:$0xff]
        %v704 = vld [vmem:[#allocation8 + $0x28] sm:$0xff]
        %v705 = vld [vmem:[#allocation8 + $0x30] sm:$0xff]
        %v706 = vld [vmem:[#allocation8 + $0x38] sm:$0xff]
        %v707 = vld [vmem:[#allocation8 + $0x40] sm:$0xff]
        %v708 = vld [vmem:[#allocation8 + $0x48] sm:$0xff]
        %v709 = vld [vmem:[#allocation8 + $0x50] sm:$0xff]
        %v710 = vld [vmem:[#allocation8 + $0x58] sm:$0xff]
        %v711 = vld [vmem:[#allocation8 + $0x60] sm:$0xff]
        %v712 = vld [vmem:[#allocation8 + $0x68] sm:$0xff]
        %v713 = vld [vmem:[#allocation8 + $0x70] sm:$0xff]
        %v714 = vld [vmem:[#allocation8 + $0x78] sm:$0xff]
        %v715 = vld [vmem:[%s10] sm:$0x1]
        %v717 = vlaneseq
        %v718 = vshrl.u32 %v717, 7
        %v719 = vsub.s32 0, %v718
        %v720 = vrot.slane %v715, %v719
        %722 = vmatprep.subr.mxu0 0.0
        %723 = vmatpush1.msra.mxu0 %v714
        %724 = vmatprep.subr.mxu0 0.0
        %725 = vmatpush1.msra.mxu0 %v713
        %726 = vmatprep.subr.mxu0 0.0
        %727 = vmatpush1.msra.mxu0 %v712
        %728 = vmatprep.subr.mxu0 0.0
        %729 = vmatpush1.msra.mxu0 %v711
        %730 = vmatprep.subr.mxu0 0.0
        %731 = vmatpush1.msra.mxu0 %v710
        %732 = vmatprep.subr.mxu0 0.0
        %733 = vmatpush1.msra.mxu0 %v709
        %734 = vmatprep.subr.mxu0 0.0
        %735 = vmatpush1.msra.mxu0 %v708
        %736 = vmatprep.subr.mxu0 0.0
        %737 = vmatpush1.msra.mxu0 %v707
        %738 = vmatprep.subr.mxu0 0.0
        %739 = vmatpush1.msra.mxu0 %v706
        %740 = vmatprep.subr.mxu0 0.0
        %741 = vmatpush1.msra.mxu0 %v705
        %742 = vmatprep.subr.mxu0 0.0
        %743 = vmatpush1.msra.mxu0 %v704
        %744 = vmatprep.subr.mxu0 0.0
        %745 = vmatpush1.msra.mxu0 %v703
        %746 = vmatprep.subr.mxu0 0.0
        %747 = vmatpush1.msra.mxu0 %v702
        %748 = vmatprep.subr.mxu0 0.0
        %749 = vmatpush1.msra.mxu0 %v701
        %750 = vmatprep.subr.mxu0 0.0
        %751 = vmatpush1.msra.mxu0 %v700
        %752 = vmatprep.subr.mxu0 0.0
        %753 = vmatpush1.msra.mxu0 %v699
        %754 = vmatprep.subr.mxu0 0.0
        %755 = vmatpush2.msra.mxu0 0.0
        %756 = vmatprep.subr.mxu0 0.0
        %757 = vmatpush2.msra.mxu0 0.0
        %758 = vmatprep.subr.mxu0 0.0
        %759 = vmatpush2.msra.mxu0 0.0
        %760 = vmatprep.subr.mxu0 0.0
        %761 = vmatpush2.msra.mxu0 0.0
        %762 = vmatprep.subr.mxu0 0.0
        %763 = vmatpush2.msra.mxu0 0.0
        %764 = vmatprep.subr.mxu0 0.0
        %765 = vmatpush2.msra.mxu0 0.0
        %766 = vmatprep.subr.mxu0 0.0
        %767 = vmatpush2.msra.mxu0 0.0
        %768 = vmatprep.subr.mxu0 0.0
        %769 = vmatpush2.msra.mxu0 0.0
        %770 = vmatprep.subr.mxu0 0.0
        %771 = vmatpush2.msra.mxu0 0.0
        %772 = vmatprep.subr.mxu0 0.0
        %773 = vmatpush2.msra.mxu0 0.0
        %774 = vmatprep.subr.mxu0 0.0
        %775 = vmatpush2.msra.mxu0 0.0
        %776 = vmatprep.subr.mxu0 0.0
        %777 = vmatpush2.msra.mxu0 0.0
        %778 = vmatprep.subr.mxu0 0.0
        %779 = vmatpush2.msra.mxu0 0.0
        %780 = vmatprep.subr.mxu0 0.0
        %781 = vmatpush2.msra.mxu0 0.0
        %782 = vmatprep.subr.mxu0 0.0
        %783 = vmatpush2.msra.mxu0 0.0
        %784 = vmatprep.subr.mxu0 0.0
        %785 = vmatpush2.msra.mxu0 0.0
        %786 = vmatprep.mubr.f32.mxu0 0.0
        %787 = vmatmul.mubr.f32.gmra.mxu0 %v698
        %v788 = vpop.f32.mrf.mxu0
        %v789 = vadd.f32 %v720, %v788
        %v790 = vpop.f32.mrf.mxu0
        %791 = vdwg.mxu0
        %792 = vst [vmem:[%s445] sm:$0xff] %v789
        %s793 = sand.u32 %s274, 1
        %s794 = scalar_lea.sflag [#allocation4], %s793
        %s795 = sand.u32 %s274, 1
        %s796 = smul.addr %s795, 8
        %s797 = scalar_lea.vmem [#allocation10], %s796
        // Predicated region
        $region81: #{tpu_custom_call.1} parent=63 // pred_check
          %p798 = pneg %p284
        $region82: #{tpu_custom_call.1} parent=63 // pred_check_branch
          %800 = sbr.rel (%p798) target = $region84
        $region83: #{tpu_custom_call.1} parent=63 // pred_region
          %s802 = ssub.s32 128, 128
          %803 = vsyncadd %s794, %s802
          %s804 = smul.addr %s30, 128
          %s805 = scalar_lea.hbm %s11, %s804
          %s807 = sshll.u32 %s797, 4
          %s808 = int_to_ptr.vmem [resolvable:$true] %s807
          %810 = dma.vmem_to_hbm [thread:$0]  %s808, 128, %s805, %s794
        $region84: #{tpu_custom_call.1} parent=63 // pred_fallthru
          _
      $region64: #{tpu_custom_call.1} parent=5 // pred_fallthru
        _
      %p811 = scmp.le.s32.totalorder 2, %s25
      // Predicated region
      $region85: #{tpu_custom_call.1} parent=5 // pred_check
        %p812 = pneg %p811
      $region86: #{tpu_custom_call.1} parent=5 // pred_check_branch
        %814 = sbr.rel (%p812) target = $region88
      $region87: #{tpu_custom_call.1} parent=5 // pred_region
        %s815 = ssub.s32 %s25, 2
        // Predicated region
        $region89: #{tpu_custom_call.1} parent=87 // pred_check
          %p816 = pneg %p290
        $region90: #{tpu_custom_call.1} parent=87 // pred_check_branch
          %818 = sbr.rel (%p816) target = $region92
        $region91: #{tpu_custom_call.1} parent=87 // pred_region
          %s819 = sand.u32 %s275, 1
          %s820 = scalar_lea.sflag [#allocation4], %s819
          %s821 = sand.u32 %s275, 1
          %s822 = smul.addr %s821, 8
          %s823 = scalar_lea.vmem [#allocation10], %s822
          %824 = dma.done %s820, 128
        $region92: #{tpu_custom_call.1} parent=87 // pred_fallthru
          _
      $region88: #{tpu_custom_call.1} parent=5 // pred_fallthru
        _
    $region6: #{tpu_custom_call.1} parent=1 // loop_footer
      %s29 = sadd.s32 1, %s25
    $region7: #{tpu_custom_call.1} parent=1 // loop_footer_branch
      %24 = sbr.rel target = $region3
    $region8: #{tpu_custom_call.1} parent=1 // loop_exit
      _
    %825 = vsyncpa [#allocation3], 1
    %s826 = scalar_lea.sflag [#allocation3], 1
    %827 = vsyncpa %s826, 1
    %828 = vsyncpa [#allocation6], 1
    %829 = vsyncpa [#allocation9], 1
    %830 = vsyncpa [#allocation4], 1
    %s831 = scalar_lea.sflag [#allocation4], 1
    %832 = vsyncpa %s831, 1

</llo_original>
